<compile_context>
chip_gen: v7x
topology: tpu7x:2x2x1
jax: 0.10.0
libtpu: 0.0.40
codegen_flags: <defaults>
</compile_context>

<pallas_src>
import jax
import jax.numpy as jnp
from jax.experimental import pallas as pl
from jax.experimental.pallas import tpu as pltpu


def critic_kernel(s_ref, a_ref, w1_ref, b1_ref,
                  w2s_ref, w2a_ref, b2_ref, w3_ref, b3_ref, o_ref):
    # Layer 1: (TB, S) @ (S, 128), bf16 inputs, f32 accumulation, f32 ReLU.
    h1 = jnp.dot(s_ref[...], w1_ref[...], preferred_element_type=jnp.float32)
    h1 = jnp.maximum(h1 + b1_ref[...], 0.0)

    # Layer 2 on concat([h1, action]) == h1 @ W2[:128] + action @ W2[128:].
    h2 = (jnp.dot(h1.astype(jnp.bfloat16), w2s_ref[...],
                  preferred_element_type=jnp.float32)
          + jnp.dot(a_ref[...], w2a_ref[...],
                    preferred_element_type=jnp.float32)
          + b2_ref[...])
    h2 = jnp.maximum(h2, 0.0)

    # Layer 3: N=1 matmul replaced by VPU multiply + XLU lane reduction.
    o_ref[...] = (jnp.sum(h2 * w3_ref[...], axis=-1, keepdims=True)
                  + b3_ref[...])


def _round_up(x, m):
    return (x + m - 1) // m * m


def critic_forward(state, action, params, *, tb=512):
    """state: (B, S) f32, action: (B, A) f32 -> (B, 1) f32."""
    w1, b1, w2s, w2a, b2, w3, b3 = params
    B, S = state.shape
    A = action.shape[1]

    # Batch tile: multiple of 16 (bf16 sublane packing), capped at `tb`.
    TB = min(_round_up(tb, 16), _round_up(B, 16))
    B_pad = _round_up(B, TB)

    bf = jnp.bfloat16
    s = jnp.pad(state, ((0, B_pad - B), (0, 0))).astype(bf)
    a = jnp.pad(action, ((0, B_pad - B), (0, 0))).astype(bf)
    w1b, w2sb, w2ab = w1.astype(bf), w2s.astype(bf), w2a.astype(bf)
    # Biases and the final projection row stay f32 (elementwise path).

    grid = (B_pad // TB,)
    const = lambda i: (0, 0)

    out = pl.pallas_call(
        critic_kernel,
        out_shape=jax.ShapeDtypeStruct((B_pad, 1), jnp.float32),
        grid=grid,
        in_specs=[
            pl.BlockSpec((TB, S), lambda i: (i, 0)),     # state tile
            pl.BlockSpec((TB, A), lambda i: (i, 0)),     # action tile
            pl.BlockSpec((S, 128), const),               # W1     (resident)
            pl.BlockSpec((1, 128), const),               # b1     (resident)
            pl.BlockSpec((128, 256), const),             # W2[:128]
            pl.BlockSpec((A, 256), const),               # W2[128:]
            pl.BlockSpec((1, 256), const),               # b2
            pl.BlockSpec((1, 256), const),               # W3 row
            pl.BlockSpec((1, 1), const),                 # b3
        ],
        out_specs=pl.BlockSpec((TB, 1), lambda i: (i, 0)),
        compiler_params=pltpu.CompilerParams(
            dimension_semantics=("parallel",)),
    )(s, a, w1b, b1, w2sb, w2ab, b2, w3, b3)

    return out[:B]


def init_params(key, state_space, action_space):
    """Deterministic init mimicking nn.Linear's U(-1/sqrt(fan_in), ...).

    Weights stored as (in_features, out_features); biases as (1, out)."""
    h1, h2 = 128, 256
    ks = jax.random.split(key, 6)

    def u(k, shape, fan_in):
        bound = 1.0 / jnp.sqrt(float(fan_in))
        return jax.random.uniform(k, shape, jnp.float32, -bound, bound)

    w1 = u(ks[0], (state_space, h1), state_space)
    b1 = u(ks[1], (1, h1), state_space)
    w2 = u(ks[2], (h1 + action_space, h2), h1 + action_space)
    b2 = u(ks[3], (1, h2), h1 + action_space)
    w3 = u(ks[4], (1, h2), h2)          # row form of l3 weight (1, 256)
    b3 = u(ks[5], (1, 1), h2)

    # Split W2 so concat([h1, action]) @ W2 == h1 @ w2s + action @ w2a.
    w2s, w2a = w2[:h1, :], w2[h1:, :]
    return (w1, b1, w2s, w2a, b2, w3, b3)


def critic_ref(state, action, params):
    """Pure-JAX reference mirroring the kernel's bf16/f32 numerics."""
    w1, b1, w2s, w2a, b2, w3, b3 = params
    bf = jnp.bfloat16
    h1 = jnp.dot(state.astype(bf), w1.astype(bf),
                 preferred_element_type=jnp.float32)
    h1 = jnp.maximum(h1 + b1, 0.0)
    h2 = (jnp.dot(h1.astype(bf), w2s.astype(bf),
                  preferred_element_type=jnp.float32)
          + jnp.dot(action.astype(bf), w2a.astype(bf),
                    preferred_element_type=jnp.float32)
          + b2)
    h2 = jnp.maximum(h2, 0.0)
    return jnp.sum(h2 * w3, axis=-1, keepdims=True) + b3


if __name__ == "__main__":
    key = jax.random.PRNGKey(0)
    k_params, k_state, k_action = jax.random.split(key, 3)

    batch = 40
    state_space = 16
    action_space = 8

    params = init_params(k_params, state_space, action_space)
    state = jax.random.normal(k_state, (batch, state_space), jnp.float32)
    action = jax.random.normal(k_action, (batch, action_space), jnp.float32)

    ref = critic_ref(state, action, params)

    # Default tile (single grid step at this batch size).
    out = jax.block_until_ready(critic_forward(state, action, params))
    assert out.shape == (batch, 1)
    assert jnp.allclose(out, ref, atol=1e-3, rtol=1e-3)

    # Small tile to exercise the multi-step batch grid + padding path.
    out_tiled = jax.block_until_ready(
        critic_forward(state, action, params, tb=16))
    assert out_tiled.shape == (batch, 1)
    assert jnp.allclose(out_tiled, ref, atol=1e-3, rtol=1e-3)

    print("KERNEL_OK")
</pallas_src>

<mosaic_0001>
module attributes {stable_mosaic.version = 11 : i64} {
  func.func @critic_kernel(%arg0: i32, %arg1: memref<48x16xbf16, #tpu.memory_space<vmem>>, %arg2: memref<48x8xbf16, #tpu.memory_space<vmem>>, %arg3: memref<16x128xbf16, #tpu.memory_space<vmem>>, %arg4: memref<1x128xf32, #tpu.memory_space<vmem>>, %arg5: memref<128x256xbf16, #tpu.memory_space<vmem>>, %arg6: memref<8x256xbf16, #tpu.memory_space<vmem>>, %arg7: memref<1x256xf32, #tpu.memory_space<vmem>>, %arg8: memref<1x256xf32, #tpu.memory_space<vmem>>, %arg9: memref<1x1xf32, #tpu.memory_space<vmem>>, %arg10: memref<48x1xf32, #tpu.memory_space<vmem>>) attributes {dimension_semantics = [#tpu.dimension_semantics<parallel>], iteration_bounds = array<i64: 1>, scalar_prefetch = 0 : i64, scratch_operands = 0 : i64, tpu.core_type = #tpu.core_type<tc>, window_params = [{transform_indices = @transform_0, window_bounds = array<i64: 48, 16>}, {transform_indices = @transform_1, window_bounds = array<i64: 48, 8>}, {pipeline_mode = #tpu.pipeline_mode<synchronous>, transform_indices = @transform_2, window_bounds = array<i64: 16, 128>}, {pipeline_mode = #tpu.pipeline_mode<synchronous>, transform_indices = @transform_3, window_bounds = array<i64: 1, 128>}, {pipeline_mode = #tpu.pipeline_mode<synchronous>, transform_indices = @transform_4, window_bounds = array<i64: 128, 256>}, {pipeline_mode = #tpu.pipeline_mode<synchronous>, transform_indices = @transform_5, window_bounds = array<i64: 8, 256>}, {pipeline_mode = #tpu.pipeline_mode<synchronous>, transform_indices = @transform_6, window_bounds = array<i64: 1, 256>}, {pipeline_mode = #tpu.pipeline_mode<synchronous>, transform_indices = @transform_7, window_bounds = array<i64: 1, 256>}, {pipeline_mode = #tpu.pipeline_mode<synchronous>, transform_indices = @transform_8, window_bounds = array<i64: 1, 1>}, {transform_indices = @transform_9, window_bounds = array<i64: 48, 1>}]} {
    %c0 = arith.constant 0 : index
    %c0_0 = arith.constant 0 : index
    %0 = vector.load %arg1[%c0, %c0_0] : memref<48x16xbf16, #tpu.memory_space<vmem>>, vector<48x16xbf16>
    %c0_1 = arith.constant 0 : index
    %c0_2 = arith.constant 0 : index
    %1 = vector.load %arg3[%c0_1, %c0_2] : memref<16x128xbf16, #tpu.memory_space<vmem>>, vector<16x128xbf16>
    %cst = arith.constant dense<0.000000e+00> : vector<48x128xf32>
    %2 = tpu.matmul %0, %1, %cst {dimension_numbers = #tpu.dot_dimension_numbers<[1], [0], [0], [1], [0, 0, 1, 1], [], []>} : vector<48x16xbf16>, vector<16x128xbf16>, vector<48x128xf32> -> vector<48x128xf32>
    %c0_3 = arith.constant 0 : index
    %c0_4 = arith.constant 0 : index
    %3 = vector.load %arg4[%c0_3, %c0_4] : memref<1x128xf32, #tpu.memory_space<vmem>>, vector<1x128xf32>
    %4 = vector.broadcast %3 : vector<1x128xf32> to vector<48x128xf32>
    %5 = arith.addf %2, %4 : vector<48x128xf32>
    %cst_5 = arith.constant 0.000000e+00 : f32
    %6 = vector.broadcast %cst_5 : f32 to vector<48x128xf32>
    %7 = arith.maximumf %5, %6 : vector<48x128xf32>
    %8 = arith.truncf %7 : vector<48x128xf32> to vector<48x128xbf16>
    %c0_6 = arith.constant 0 : index
    %c0_7 = arith.constant 0 : index
    %9 = vector.load %arg5[%c0_6, %c0_7] : memref<128x256xbf16, #tpu.memory_space<vmem>>, vector<128x256xbf16>
    %cst_8 = arith.constant dense<0.000000e+00> : vector<48x256xf32>
    %10 = tpu.matmul %8, %9, %cst_8 {dimension_numbers = #tpu.dot_dimension_numbers<[1], [0], [0], [1], [0, 0, 1, 1], [], []>} : vector<48x128xbf16>, vector<128x256xbf16>, vector<48x256xf32> -> vector<48x256xf32>
    %c0_9 = arith.constant 0 : index
    %c0_10 = arith.constant 0 : index
    %11 = vector.load %arg2[%c0_9, %c0_10] : memref<48x8xbf16, #tpu.memory_space<vmem>>, vector<48x8xbf16>
    %c0_11 = arith.constant 0 : index
    %c0_12 = arith.constant 0 : index
    %12 = vector.load %arg6[%c0_11, %c0_12] : memref<8x256xbf16, #tpu.memory_space<vmem>>, vector<8x256xbf16>
    %cst_13 = arith.constant dense<0.000000e+00> : vector<48x256xf32>
    %13 = tpu.matmul %11, %12, %cst_13 {dimension_numbers = #tpu.dot_dimension_numbers<[1], [0], [0], [1], [0, 0, 1, 1], [], []>} : vector<48x8xbf16>, vector<8x256xbf16>, vector<48x256xf32> -> vector<48x256xf32>
    %14 = arith.addf %10, %13 : vector<48x256xf32>
    %c0_14 = arith.constant 0 : index
    %c0_15 = arith.constant 0 : index
    %15 = vector.load %arg7[%c0_14, %c0_15] : memref<1x256xf32, #tpu.memory_space<vmem>>, vector<1x256xf32>
    %16 = vector.broadcast %15 : vector<1x256xf32> to vector<48x256xf32>
    %17 = arith.addf %14, %16 : vector<48x256xf32>
    %cst_16 = arith.constant 0.000000e+00 : f32
    %18 = vector.broadcast %cst_16 : f32 to vector<48x256xf32>
    %19 = arith.maximumf %17, %18 : vector<48x256xf32>
    %c0_17 = arith.constant 0 : index
    %c0_18 = arith.constant 0 : index
    %20 = vector.load %arg8[%c0_17, %c0_18] : memref<1x256xf32, #tpu.memory_space<vmem>>, vector<1x256xf32>
    %21 = vector.broadcast %20 : vector<1x256xf32> to vector<48x256xf32>
    %22 = arith.mulf %19, %21 : vector<48x256xf32>
    %cst_19 = arith.constant dense<0.000000e+00> : vector<48xf32>
    %23 = vector.multi_reduction <add>, %22, %cst_19 [1] : vector<48x256xf32> to vector<48xf32>
    %24 = vector.shape_cast %23 : vector<48xf32> to vector<48x1xf32>
    %c0_20 = arith.constant 0 : index
    %c0_21 = arith.constant 0 : index
    %25 = vector.load %arg9[%c0_20, %c0_21] : memref<1x1xf32, #tpu.memory_space<vmem>>, vector<1x1xf32>
    %26 = vector.broadcast %25 : vector<1x1xf32> to vector<48x1xf32>
    %27 = arith.addf %24, %26 : vector<48x1xf32>
    %c0_22 = arith.constant 0 : index
    %c0_23 = arith.constant 0 : index
    %28 = vector.load %arg10[%c0_22, %c0_23] : memref<48x1xf32, #tpu.memory_space<vmem>>, vector<48x1xf32>
    tpu.vector_store %arg10[%c0_22, %c0_23], %27 {strides = array<i32>} : memref<48x1xf32, #tpu.memory_space<vmem>>, vector<48x1xf32>,
    return
  }
  func.func @transform_0(%arg0: i32) -> (i32, i32) {
    %c0_i32 = arith.constant 0 : i32
    %c0_i32_0 = arith.constant 0 : i32
    return %arg0, %c0_i32 : i32, i32
  }
  func.func @transform_1(%arg0: i32) -> (i32, i32) {
    %c0_i32 = arith.constant 0 : i32
    %c0_i32_0 = arith.constant 0 : i32
    return %arg0, %c0_i32 : i32, i32
  }
  func.func @transform_2(%arg0: i32) -> (i32, i32) {
    %c0_i32 = arith.constant 0 : i32
    %c0_i32_0 = arith.constant 0 : i32
    %c0_i32_1 = arith.constant 0 : i32
    return %c0_i32, %c0_i32_0 : i32, i32
  }
  func.func @transform_3(%arg0: i32) -> (i32, i32) {
    %c0_i32 = arith.constant 0 : i32
    %c0_i32_0 = arith.constant 0 : i32
    %c0_i32_1 = arith.constant 0 : i32
    return %c0_i32, %c0_i32_0 : i32, i32
  }
  func.func @transform_4(%arg0: i32) -> (i32, i32) {
    %c0_i32 = arith.constant 0 : i32
    %c0_i32_0 = arith.constant 0 : i32
    %c0_i32_1 = arith.constant 0 : i32
    return %c0_i32, %c0_i32_0 : i32, i32
  }
  func.func @transform_5(%arg0: i32) -> (i32, i32) {
    %c0_i32 = arith.constant 0 : i32
    %c0_i32_0 = arith.constant 0 : i32
    %c0_i32_1 = arith.constant 0 : i32
    return %c0_i32, %c0_i32_0 : i32, i32
  }
  func.func @transform_6(%arg0: i32) -> (i32, i32) {
    %c0_i32 = arith.constant 0 : i32
    %c0_i32_0 = arith.constant 0 : i32
    %c0_i32_1 = arith.constant 0 : i32
    return %c0_i32, %c0_i32_0 : i32, i32
  }
  func.func @transform_7(%arg0: i32) -> (i32, i32) {
    %c0_i32 = arith.constant 0 : i32
    %c0_i32_0 = arith.constant 0 : i32
    %c0_i32_1 = arith.constant 0 : i32
    return %c0_i32, %c0_i32_0 : i32, i32
  }
  func.func @transform_8(%arg0: i32) -> (i32, i32) {
    %c0_i32 = arith.constant 0 : i32
    %c0_i32_0 = arith.constant 0 : i32
    %c0_i32_1 = arith.constant 0 : i32
    return %c0_i32, %c0_i32_0 : i32, i32
  }
  func.func @transform_9(%arg0: i32) -> (i32, i32) {
    %c0_i32 = arith.constant 0 : i32
    %c0_i32_0 = arith.constant 0 : i32
    return %arg0, %c0_i32 : i32, i32
  }
}

</mosaic_0001>

<llo_original>
// kernel: tpu_custom_call.1
$region0: #{tpu_custom_call.1}
  #allocation0 [shape = 'u32[]', space=smem, size = 0x4, offset = 0x4, fixed_abs, tag = 'smem constant byte address 0x4 - core index']
  #allocation1 [shape = 'u32[144,128]{1,0:T(1,128)}', space=vmem, size = 0x12000, scoped, tag = 'internal scratch']
  #allocation2 [shape = 'f32[1,1]{1,0:T(1,128)S(1)}', space=vmem, size = 0x200, scoped, tag = 'scoped memory for tpu_custom_call.1']
  %s0 = inlined_call_operand.vmem [shape: bf16[48,16], index: 0, kind: input, shape index: {}]
  %s1 = inlined_call_operand.vmem [shape: bf16[48,8], index: 1, kind: input, shape index: {}]
  %s2 = inlined_call_operand.vmem [shape: bf16[16,128], index: 2, kind: input, shape index: {}]
  %s3 = inlined_call_operand.vmem [shape: f32[1,128], index: 3, kind: input, shape index: {}]
  %s4 = inlined_call_operand.hbm [shape: bf16[128,256], index: 4, kind: input, shape index: {}]
  %s5 = inlined_call_operand.vmem [shape: bf16[8,256], index: 5, kind: input, shape index: {}]
  %s6 = inlined_call_operand.vmem [shape: f32[1,256], index: 6, kind: input, shape index: {}]
  %s7 = inlined_call_operand.vmem [shape: f32[1,256], index: 7, kind: input, shape index: {}]
  %s8 = inlined_call_operand.<no memory space> [shape: f32[1,1], index: 8, kind: input, shape index: {}]
  %s9 = inlined_call_operand.vmem [shape: f32[48,1], index: 9, kind: output, shape index: {}]
  %s10 = sld [smem:[#allocation0]]
  $region50: #{tpu_custom_call.1} parent=0
    _
  %s12 = ssub.s32 1, %s10
  %s13 = scalar_select 0, %s12, %s10
  %v14 = vstv %s8
  %15 = vst [vmem:[#allocation2] sm:$0x1] %v14
  $region1: #{tpu_custom_call.1} parent=0
    #allocation3 [shape = 'u8[65536]{0}', space=vmem, size = 0x10000, scoped, tag = 'input window, operand 4, single buffered']
    #allocation4 [shape = 's32[1]{0}', space=sflag, size = 0x4, scoped, tag = 'scoped memory for tpu_custom_call.1']
    %16 = vsyncpa [#allocation4], 0
    // Predicated region
    $region2: #{tpu_custom_call.1} parent=1 // pred_check
      _
    $region3: #{tpu_custom_call.1} parent=1 // pred_check_branch
      %18 = sbr.rel (0) target = $region5
    $region4: #{tpu_custom_call.1} parent=1 // pred_region
      _
    $region5: #{tpu_custom_call.1} parent=1 // pred_fallthru
      _
    // Predicated region
    $region6: #{tpu_custom_call.1} parent=1 // pred_check
      _
    $region7: #{tpu_custom_call.1} parent=1 // pred_check_branch
      %20 = sbr.rel (0) target = $region9
    $region8: #{tpu_custom_call.1} parent=1 // pred_region
      _
    $region9: #{tpu_custom_call.1} parent=1 // pred_fallthru
      _
    // Predicated region
    $region10: #{tpu_custom_call.1} parent=1 // pred_check
      _
    $region11: #{tpu_custom_call.1} parent=1 // pred_check_branch
      %22 = sbr.rel (0) target = $region13
    $region12: #{tpu_custom_call.1} parent=1 // pred_region
      _
    $region13: #{tpu_custom_call.1} parent=1 // pred_fallthru
      _
    // Predicated region
    $region14: #{tpu_custom_call.1} parent=1 // pred_check
      _
    $region15: #{tpu_custom_call.1} parent=1 // pred_check_branch
      %24 = sbr.rel (0) target = $region17
    $region16: #{tpu_custom_call.1} parent=1 // pred_region
      _
    $region17: #{tpu_custom_call.1} parent=1 // pred_fallthru
      _
    // Predicated region
    $region18: #{tpu_custom_call.1} parent=1 // pred_check
      _
    $region19: #{tpu_custom_call.1} parent=1 // pred_check_branch
      %26 = sbr.rel (0) target = $region21
    $region20: #{tpu_custom_call.1} parent=1 // pred_region
      %s28 = ssub.s32 2048, 2048
      %29 = vsyncadd [#allocation4], %s28
      %s30 = sshll.u32 [#allocation3], 4
      %s31 = int_to_ptr.vmem [resolvable:$true] %s30
      %36 = dma.hbm_to_vmem [thread:$0]  %s4, 2048, %s31, [#allocation4], 128, 128, 8
    $region21: #{tpu_custom_call.1} parent=1 // pred_fallthru
      _
    // Predicated region
    $region22: #{tpu_custom_call.1} parent=1 // pred_check
      _
    $region23: #{tpu_custom_call.1} parent=1 // pred_check_branch
      %38 = sbr.rel (0) target = $region25
    $region24: #{tpu_custom_call.1} parent=1 // pred_region
      _
    $region25: #{tpu_custom_call.1} parent=1 // pred_fallthru
      _
    // Predicated region
    $region26: #{tpu_custom_call.1} parent=1 // pred_check
      _
    $region27: #{tpu_custom_call.1} parent=1 // pred_check_branch
      %40 = sbr.rel (0) target = $region29
    $region28: #{tpu_custom_call.1} parent=1 // pred_region
      _
    $region29: #{tpu_custom_call.1} parent=1 // pred_fallthru
      _
    // Predicated region
    $region30: #{tpu_custom_call.1} parent=1 // pred_check
      _
    $region31: #{tpu_custom_call.1} parent=1 // pred_check_branch
      %42 = sbr.rel (0) target = $region33
    $region32: #{tpu_custom_call.1} parent=1 // pred_region
      _
    $region33: #{tpu_custom_call.1} parent=1 // pred_fallthru
      _
    // Predicated region
    $region34: #{tpu_custom_call.1} parent=1 // pred_check
      _
    $region35: #{tpu_custom_call.1} parent=1 // pred_check_branch
      %44 = sbr.rel (0) target = $region37
    $region36: #{tpu_custom_call.1} parent=1 // pred_region
      _
    $region37: #{tpu_custom_call.1} parent=1 // pred_fallthru
      _
    // Predicated region
    $region38: #{tpu_custom_call.1} parent=1 // pred_check
      _
    $region39: #{tpu_custom_call.1} parent=1 // pred_check_branch
      %46 = sbr.rel (0) target = $region41
    $region40: #{tpu_custom_call.1} parent=1 // pred_region
      %47 = dma.done [#allocation4], 2048
    $region41: #{tpu_custom_call.1} parent=1 // pred_fallthru
      _
    %v49 = vld [vmem:[%s0] sm:$0xf]
    %v50 = vld [vmem:[%s0 + $0x4] sm:$0xf]
    %v51 = vld [vmem:[%s0 + $0x8] sm:$0xf]
    %v52 = vld [vmem:[%s0 + $0xc] sm:$0xf]
    %v53 = vld [vmem:[%s0 + $0x10] sm:$0xf]
    %v54 = vld [vmem:[%s0 + $0x14] sm:$0xf]
    %v55 = vld [vmem:[%s2] sm:$0xf]
    %v56 = vld [vmem:[%s2 + $0x4] sm:$0xf]
    %v57 = vld [vmem:[%s3] sm:$0x1]
    %v59 = vlaneseq
    %v60 = vshrl.u32 %v59, 7
    %v61 = vsub.s32 0, %v60
    %v62 = vrot.slane %v57, %v61
    %v70 = vunpack.c.l.b16 %v49
    %v71 = vunpack.c.l.b16 %v50
    %v72 = vunpack.c.l.b16 %v51
    %v73 = vunpack.c.l.b16 %v52
    %v74 = vunpack.c.l.b16 %v53
    %v75 = vunpack.c.l.b16 %v54
    %v76 = vpack.c.b16 %v71, %v70
    %v77 = vpack.c.b16 %v73, %v72
    %v78 = vpack.c.b16 %v75, %v74
    %v81 = vunpack.c.l.b16 %v55
    %v82 = vunpack.c.l.b16 %v56
    %v83 = vpack.c.b16 %v82, %v81
    %vm85 = vcmask 130048
    %v87 = vsel %vm85, %v76, 0
    %v90 = vsel %vm85, %v77, 0
    %v93 = vsel %vm85, %v78, 0
    %95 = vmatprep.subr.bf16.mxu0 0
    %96 = vmatpush1.bf16.msra.mxu0 %v83
    %97 = vmatprep.subr.bf16.mxu0 0
    %98 = vmatpush1.bf16.msra.mxu0 0
    %99 = vmatprep.subr.bf16.mxu0 0
    %100 = vmatpush1.bf16.msra.mxu0 0
    %101 = vmatprep.subr.bf16.mxu0 0
    %102 = vmatpush1.bf16.msra.mxu0 0
    %103 = vmatprep.subr.bf16.mxu0 0
    %104 = vmatpush1.bf16.msra.mxu0 0
    %105 = vmatprep.subr.bf16.mxu0 0
    %106 = vmatpush1.bf16.msra.mxu0 0
    %107 = vmatprep.subr.bf16.mxu0 0
    %108 = vmatpush1.bf16.msra.mxu0 0
    %109 = vmatprep.subr.bf16.mxu0 0
    %110 = vmatpush1.bf16.msra.mxu0 0
    %111 = vmatprep.subr.bf16.mxu0 0
    %112 = vmatpush1.bf16.msra.mxu0 0
    %113 = vmatprep.subr.bf16.mxu0 0
    %114 = vmatpush1.bf16.msra.mxu0 0
    %115 = vmatprep.subr.bf16.mxu0 0
    %116 = vmatpush1.bf16.msra.mxu0 0
    %117 = vmatprep.subr.bf16.mxu0 0
    %118 = vmatpush1.bf16.msra.mxu0 0
    %119 = vmatprep.subr.bf16.mxu0 0
    %120 = vmatpush1.bf16.msra.mxu0 0
    %121 = vmatprep.subr.bf16.mxu0 0
    %122 = vmatpush1.bf16.msra.mxu0 0
    %123 = vmatprep.subr.bf16.mxu0 0
    %124 = vmatpush1.bf16.msra.mxu0 0
    %125 = vmatprep.subr.bf16.mxu0 0
    %126 = vmatpush1.bf16.msra.mxu0 0
    %127 = vmatprep.mubr.bf16.mxu0 0
    %128 = vmatmul.mubr.bf16.gmra.mrb[0].mxu0 %v87
    %v129 = vpop.f32.mrb[0].mxu0
    %v130 = vadd.f32 %v62, %v129
    %v131 = vpop.f32.mrb[0].mxu0
    %v132 = vpop.f32.mrb[0].mxu0
    %v133 = vadd.f32 %v62, %v132
    %v134 = vpop.f32.mrb[0].mxu0
    %135 = vmatprep.mubr.bf16.mxu0 0
    %136 = vmatmul.mubr.bf16.gmra.mrb[0].mxu0 %v90
    %v137 = vpop.f32.mrb[0].mxu0
    %v138 = vadd.f32 %v62, %v137
    %v139 = vpop.f32.mrb[0].mxu0
    %v140 = vpop.f32.mrb[0].mxu0
    %v141 = vadd.f32 %v62, %v140
    %v142 = vpop.f32.mrb[0].mxu0
    %143 = vmatprep.mubr.bf16.mxu0 0
    %144 = vmatmul.mubr.bf16.gmra.mrb[0].mxu0 %v93
    %v145 = vpop.f32.mrb[0].mxu0
    %v146 = vadd.f32 %v62, %v145
    %v147 = vpop.f32.mrb[0].mxu0
    %v148 = vpop.f32.mrb[0].mxu0
    %v149 = vadd.f32 %v62, %v148
    %v150 = vpop.f32.mrb[0].mxu0
    %151 = vdwg.mxu0
    %v152 = vmax.f32 %v130, 0.0
    %v153 = vmax.f32 %v133, 0.0
    %v154 = vmax.f32 %v138, 0.0
    %v155 = vmax.f32 %v141, 0.0
    %v156 = vmax.f32 %v146, 0.0
    %v157 = vmax.f32 %v149, 0.0
    %v158 = vpack.c.bf16 %v153, %v152
    %v159 = vpack.c.bf16 %v155, %v154
    %v160 = vpack.c.bf16 %v157, %v156
    %v161 = vld [vmem:[#allocation3] sm:$0xff]
    %v162 = vld [vmem:[#allocation3 + $0x8] sm:$0xff]
    %v163 = vld [vmem:[#allocation3 + $0x10] sm:$0xff]
    %v164 = vld [vmem:[#allocation3 + $0x18] sm:$0xff]
    %v165 = vld [vmem:[#allocation3 + $0x20] sm:$0xff]
    %v166 = vld [vmem:[#allocation3 + $0x28] sm:$0xff]
    %v167 = vld [vmem:[#allocation3 + $0x30] sm:$0xff]
    %v168 = vld [vmem:[#allocation3 + $0x38] sm:$0xff]
    %v169 = vld [vmem:[#allocation3 + $0x40] sm:$0xff]
    %v170 = vld [vmem:[#allocation3 + $0x48] sm:$0xff]
    %v171 = vld [vmem:[#allocation3 + $0x50] sm:$0xff]
    %v172 = vld [vmem:[#allocation3 + $0x58] sm:$0xff]
    %v173 = vld [vmem:[#allocation3 + $0x60] sm:$0xff]
    %v174 = vld [vmem:[#allocation3 + $0x68] sm:$0xff]
    %v175 = vld [vmem:[#allocation3 + $0x70] sm:$0xff]
    %v176 = vld [vmem:[#allocation3 + $0x78] sm:$0xff]
    %v177 = vld [vmem:[%s1] sm:$0xf]
    %v178 = vld [vmem:[%s1 + $0x4] sm:$0xf]
    %v179 = vld [vmem:[%s1 + $0x8] sm:$0xf]
    %v180 = vld [vmem:[%s1 + $0xc] sm:$0xf]
    %v181 = vld [vmem:[%s1 + $0x10] sm:$0xf]
    %v182 = vld [vmem:[%s1 + $0x14] sm:$0xf]
    %v183 = vld [vmem:[%s5] sm:$0xff]
    %v190 = vunpack.c.l.b16 %v177
    %v191 = vunpack.c.l.b16 %v178
    %v192 = vunpack.c.l.b16 %v179
    %v193 = vunpack.c.l.b16 %v180
    %v194 = vunpack.c.l.b16 %v181
    %v195 = vunpack.c.l.b16 %v182
    %v196 = vpack.c.b16 %v191, %v190
    %v197 = vpack.c.b16 %v193, %v192
    %v198 = vpack.c.b16 %v195, %v194
    %v200 = vunpack.c.l.b16 %v183
    %v201 = vunpack.c.h.b16 %v183
    %v202 = vpack.c.b16 %v200, %v200
    %v203 = vpack.c.b16 %v201, %v201
    %vm204 = vcmask 64512
    %v206 = vsel %vm204, %v196, 0
    %v209 = vsel %vm204, %v197, 0
    %v212 = vsel %vm204, %v198, 0
    %vm214 = vcmask 1043456
    %v216 = vsel %vm214, %v202, 0
    %v219 = vsel %vm214, %v203, 0
    %221 = vmatprep.subr.bf16.mxu0 %v219
    %222 = vmatpush1.bf16.msra.mxu0 %v216
    %223 = vmatprep.subr.bf16.mxu0 0
    %224 = vmatpush1.bf16.msra.mxu0 0
    %225 = vmatprep.subr.bf16.mxu0 0
    %226 = vmatpush1.bf16.msra.mxu0 0
    %227 = vmatprep.subr.bf16.mxu0 0
    %228 = vmatpush1.bf16.msra.mxu0 0
    %229 = vmatprep.subr.bf16.mxu0 0
    %230 = vmatpush1.bf16.msra.mxu0 0
    %231 = vmatprep.subr.bf16.mxu0 0
    %232 = vmatpush1.bf16.msra.mxu0 0
    %233 = vmatprep.subr.bf16.mxu0 0
    %234 = vmatpush1.bf16.msra.mxu0 0
    %235 = vmatprep.subr.bf16.mxu0 0
    %236 = vmatpush1.bf16.msra.mxu0 0
    %237 = vmatprep.subr.bf16.mxu0 0
    %238 = vmatpush1.bf16.msra.mxu0 0
    %239 = vmatprep.subr.bf16.mxu0 0
    %240 = vmatpush1.bf16.msra.mxu0 0
    %241 = vmatprep.subr.bf16.mxu0 0
    %242 = vmatpush1.bf16.msra.mxu0 0
    %243 = vmatprep.subr.bf16.mxu0 0
    %244 = vmatpush1.bf16.msra.mxu0 0
    %245 = vmatprep.subr.bf16.mxu0 0
    %246 = vmatpush1.bf16.msra.mxu0 0
    %247 = vmatprep.subr.bf16.mxu0 0
    %248 = vmatpush1.bf16.msra.mxu0 0
    %249 = vmatprep.subr.bf16.mxu0 0
    %250 = vmatpush1.bf16.msra.mxu0 0
    %251 = vmatprep.subr.bf16.mxu0 0
    %252 = vmatpush1.bf16.msra.mxu0 0
    %253 = vmatprep.mubr.bf16.mxu0 0
    %254 = vmatmul.mubr.bf16.gmra.mrb[0].mxu0 %v206
    %v255 = vpop.f32.mrb[0].mxu0
    %v256 = vadd.f32 0.0, %v255
    %v257 = vpop.f32.mrb[0].mxu0
    %v258 = vadd.f32 0.0, %v257
    %v259 = vpop.f32.mrb[0].mxu0
    %v260 = vadd.f32 0.0, %v259
    %v261 = vpop.f32.mrb[0].mxu0
    %v262 = vadd.f32 0.0, %v261
    %263 = vmatprep.mubr.bf16.mxu0 0
    %264 = vmatmul.mubr.bf16.gmra.mrb[0].mxu0 %v209
    %v265 = vpop.f32.mrb[0].mxu0
    %v266 = vadd.f32 0.0, %v265
    %v267 = vpop.f32.mrb[0].mxu0
    %v268 = vadd.f32 0.0, %v267
    %v269 = vpop.f32.mrb[0].mxu0
    %v270 = vadd.f32 0.0, %v269
    %v271 = vpop.f32.mrb[0].mxu0
    %v272 = vadd.f32 0.0, %v271
    %273 = vmatprep.mubr.bf16.mxu0 0
    %274 = vmatmul.mubr.bf16.gmra.mrb[0].mxu0 %v212
    %v275 = vpop.f32.mrb[0].mxu0
    %v276 = vadd.f32 0.0, %v275
    %v277 = vpop.f32.mrb[0].mxu0
    %v278 = vadd.f32 0.0, %v277
    %v279 = vpop.f32.mrb[0].mxu0
    %v280 = vadd.f32 0.0, %v279
    %v281 = vpop.f32.mrb[0].mxu0
    %v282 = vadd.f32 0.0, %v281
    %283 = vdwg.mxu0
    %v300 = vunpack.c.l.b16 %v161
    %v301 = vunpack.c.h.b16 %v161
    %v302 = vunpack.c.l.b16 %v162
    %v303 = vunpack.c.h.b16 %v162
    %v304 = vunpack.c.l.b16 %v163
    %v305 = vunpack.c.h.b16 %v163
    %v306 = vunpack.c.l.b16 %v164
    %v307 = vunpack.c.h.b16 %v164
    %v308 = vunpack.c.l.b16 %v165
    %v309 = vunpack.c.h.b16 %v165
    %v310 = vunpack.c.l.b16 %v166
    %v311 = vunpack.c.h.b16 %v166
    %v312 = vunpack.c.l.b16 %v167
    %v313 = vunpack.c.h.b16 %v167
    %v314 = vunpack.c.l.b16 %v168
    %v315 = vunpack.c.h.b16 %v168
    %v316 = vunpack.c.l.b16 %v169
    %v317 = vunpack.c.h.b16 %v169
    %v318 = vunpack.c.l.b16 %v170
    %v319 = vunpack.c.h.b16 %v170
    %v320 = vunpack.c.l.b16 %v171
    %v321 = vunpack.c.h.b16 %v171
    %v322 = vunpack.c.l.b16 %v172
    %v323 = vunpack.c.h.b16 %v172
    %v324 = vunpack.c.l.b16 %v173
    %v325 = vunpack.c.h.b16 %v173
    %v326 = vunpack.c.l.b16 %v174
    %v327 = vunpack.c.h.b16 %v174
    %v328 = vunpack.c.l.b16 %v175
    %v329 = vunpack.c.h.b16 %v175
    %v330 = vunpack.c.l.b16 %v176
    %v331 = vunpack.c.h.b16 %v176
    %v332 = vpack.c.b16 %v302, %v300
    %v333 = vpack.c.b16 %v303, %v301
    %v334 = vpack.c.b16 %v306, %v304
    %v335 = vpack.c.b16 %v307, %v305
    %v336 = vpack.c.b16 %v310, %v308
    %v337 = vpack.c.b16 %v311, %v309
    %v338 = vpack.c.b16 %v314, %v312
    %v339 = vpack.c.b16 %v315, %v313
    %v340 = vpack.c.b16 %v318, %v316
    %v341 = vpack.c.b16 %v319, %v317
    %v342 = vpack.c.b16 %v322, %v320
    %v343 = vpack.c.b16 %v323, %v321
    %v344 = vpack.c.b16 %v326, %v324
    %v345 = vpack.c.b16 %v327, %v325
    %v346 = vpack.c.b16 %v330, %v328
    %v347 = vpack.c.b16 %v331, %v329
    %364 = vmatprep.subr.bf16.mxu0 %v333
    %365 = vmatpush1.bf16.msra.mxu0 %v332
    %366 = vmatprep.subr.bf16.mxu0 %v335
    %367 = vmatpush1.bf16.msra.mxu0 %v334
    %368 = vmatprep.subr.bf16.mxu0 %v337
    %369 = vmatpush1.bf16.msra.mxu0 %v336
    %370 = vmatprep.subr.bf16.mxu0 %v339
    %371 = vmatpush1.bf16.msra.mxu0 %v338
    %372 = vmatprep.subr.bf16.mxu0 %v341
    %373 = vmatpush1.bf16.msra.mxu0 %v340
    %374 = vmatprep.subr.bf16.mxu0 %v343
    %375 = vmatpush1.bf16.msra.mxu0 %v342
    %376 = vmatprep.subr.bf16.mxu0 %v345
    %377 = vmatpush1.bf16.msra.mxu0 %v344
    %378 = vmatprep.subr.bf16.mxu0 %v347
    %379 = vmatpush1.bf16.msra.mxu0 %v346
    %380 = vmatprep.subr.bf16.mxu0 0
    %381 = vmatpush1.bf16.msra.mxu0 0
    %382 = vmatprep.subr.bf16.mxu0 0
    %383 = vmatpush1.bf16.msra.mxu0 0
    %384 = vmatprep.subr.bf16.mxu0 0
    %385 = vmatpush1.bf16.msra.mxu0 0
    %386 = vmatprep.subr.bf16.mxu0 0
    %387 = vmatpush1.bf16.msra.mxu0 0
    %388 = vmatprep.subr.bf16.mxu0 0
    %389 = vmatpush1.bf16.msra.mxu0 0
    %390 = vmatprep.subr.bf16.mxu0 0
    %391 = vmatpush1.bf16.msra.mxu0 0
    %392 = vmatprep.subr.bf16.mxu0 0
    %393 = vmatpush1.bf16.msra.mxu0 0
    %394 = vmatprep.subr.bf16.mxu0 0
    %395 = vmatpush1.bf16.msra.mxu0 0
    %396 = vmatprep.mubr.bf16.mxu0 0
    %397 = vmatmul.mubr.bf16.gmra.mrb[0].mxu0 %v158
    %v398 = vpop.f32.mrb[0].mxu0
    %v399 = vadd.f32 %v256, %v398
    %v400 = vpop.f32.mrb[0].mxu0
    %v401 = vadd.f32 %v258, %v400
    %v402 = vpop.f32.mrb[0].mxu0
    %v403 = vadd.f32 %v260, %v402
    %v404 = vpop.f32.mrb[0].mxu0
    %v405 = vadd.f32 %v262, %v404
    %406 = vmatprep.mubr.bf16.mxu0 0
    %407 = vmatmul.mubr.bf16.gmra.mrb[0].mxu0 %v159
    %v408 = vpop.f32.mrb[0].mxu0
    %v409 = vadd.f32 %v266, %v408
    %v410 = vpop.f32.mrb[0].mxu0
    %v411 = vadd.f32 %v268, %v410
    %v412 = vpop.f32.mrb[0].mxu0
    %v413 = vadd.f32 %v270, %v412
    %v414 = vpop.f32.mrb[0].mxu0
    %v415 = vadd.f32 %v272, %v414
    %416 = vmatprep.mubr.bf16.mxu0 0
    %417 = vmatmul.mubr.bf16.gmra.mrb[0].mxu0 %v160
    %v418 = vpop.f32.mrb[0].mxu0
    %v419 = vadd.f32 %v276, %v418
    %v420 = vpop.f32.mrb[0].mxu0
    %v421 = vadd.f32 %v278, %v420
    %v422 = vpop.f32.mrb[0].mxu0
    %v423 = vadd.f32 %v280, %v422
    %v424 = vpop.f32.mrb[0].mxu0
    %v425 = vadd.f32 %v282, %v424
    %426 = vdwg.mxu0
    %v427 = vld [vmem:[%s6] sm:$0x3]
    %v429 = vlaneseq
    %v430 = vshrl.u32 %v429, 7
    %v431 = vsub.s32 0, %v430
    %v432 = vrot.slane %v427, %v431
    %v433 = vlaneseq
    %v434 = vshrl.u32 %v433, 7
    %v435 = vsub.s32 1, %v434
    %v436 = vrot.slane %v427, %v435
    %v439 = vadd.f32 %v399, %v432
    %v440 = vadd.f32 %v401, %v436
    %v441 = vadd.f32 %v403, %v432
    %v442 = vadd.f32 %v405, %v436
    %v443 = vadd.f32 %v409, %v432
    %v444 = vadd.f32 %v411, %v436
    %v445 = vadd.f32 %v413, %v432
    %v446 = vadd.f32 %v415, %v436
    %v447 = vadd.f32 %v419, %v432
    %v448 = vadd.f32 %v421, %v436
    %v449 = vadd.f32 %v423, %v432
    %v450 = vadd.f32 %v425, %v436
    %v451 = vmax.f32 %v439, 0.0
    %v452 = vmax.f32 %v440, 0.0
    %v453 = vmax.f32 %v441, 0.0
    %v454 = vmax.f32 %v442, 0.0
    %v455 = vmax.f32 %v443, 0.0
    %v456 = vmax.f32 %v444, 0.0
    %v457 = vmax.f32 %v445, 0.0
    %v458 = vmax.f32 %v446, 0.0
    %v459 = vmax.f32 %v447, 0.0
    %v460 = vmax.f32 %v448, 0.0
    %v461 = vmax.f32 %v449, 0.0
    %v462 = vmax.f32 %v450, 0.0
    %v463 = vld [vmem:[%s7] sm:$0x3]
    %v465 = vlaneseq
    %v466 = vshrl.u32 %v465, 7
    %v467 = vsub.s32 0, %v466
    %v468 = vrot.slane %v463, %v467
    %v469 = vlaneseq
    %v470 = vshrl.u32 %v469, 7
    %v471 = vsub.s32 1, %v470
    %v472 = vrot.slane %v463, %v471
    %v475 = vmul.f32 %v451, %v468
    %v476 = vmul.f32 %v452, %v472
    %v477 = vmul.f32 %v453, %v468
    %v478 = vmul.f32 %v454, %v472
    %v479 = vmul.f32 %v455, %v468
    %v480 = vmul.f32 %v456, %v472
    %v481 = vmul.f32 %v457, %v468
    %v482 = vmul.f32 %v458, %v472
    %v483 = vmul.f32 %v459, %v468
    %v484 = vmul.f32 %v460, %v472
    %v485 = vmul.f32 %v461, %v468
    %v486 = vmul.f32 %v462, %v472
    %v487 = vadd.f32 %v475, %v476
    %488 = vadd.xlane.f32.xlu0 %v487
    %v489 = vpop.xlane.xlu0 %488
    %v490 = vadd.f32 %v477, %v478
    %491 = vadd.xlane.f32.xlu0 %v490
    %v492 = vpop.xlane.xlu0 %491
    %v493 = vadd.f32 %v479, %v480
    %494 = vadd.xlane.f32.xlu0 %v493
    %v495 = vpop.xlane.xlu0 %494
    %v496 = vadd.f32 %v481, %v482
    %497 = vadd.xlane.f32.xlu0 %v496
    %v498 = vpop.xlane.xlu0 %497
    %v499 = vadd.f32 %v483, %v484
    %500 = vadd.xlane.f32.xlu0 %v499
    %v501 = vpop.xlane.xlu0 %500
    %v502 = vadd.f32 %v485, %v486
    %503 = vadd.xlane.f32.xlu0 %v502
    %v504 = vpop.xlane.xlu0 %503
    %v505 = vld [vmem:[#allocation2] sm:$0x1]
    %v507 = vlaneseq
    %v508 = vshrl.u32 %v507, 7
    %v509 = vsub.s32 0, %v508
    %v510 = vrot.slane %v505, %v509
    %v512 = vadd.f32 %v489, %v510
    %v513 = vadd.f32 %v492, %v510
    %v514 = vadd.f32 %v495, %v510
    %v515 = vadd.f32 %v498, %v510
    %v516 = vadd.f32 %v501, %v510
    %v517 = vadd.f32 %v504, %v510
    %vm518 = vcmask 7168
    %519 = vst.msk [vmem:[%s9] sm:$0xff] %vm518, %v512
    %520 = vst.msk [vmem:[%s9 + $0x8] sm:$0xff] %vm518, %v513
    %521 = vst.msk [vmem:[%s9 + $0x10] sm:$0xff] %vm518, %v514
    %522 = vst.msk [vmem:[%s9 + $0x18] sm:$0xff] %vm518, %v515
    %523 = vst.msk [vmem:[%s9 + $0x20] sm:$0xff] %vm518, %v516
    %524 = vst.msk [vmem:[%s9 + $0x28] sm:$0xff] %vm518, %v517
    // Predicated region
    $region42: #{tpu_custom_call.1} parent=1 // pred_check
      _
    $region43: #{tpu_custom_call.1} parent=1 // pred_check_branch
      %526 = sbr.rel (0) target = $region45
    $region44: #{tpu_custom_call.1} parent=1 // pred_region
      _
    $region45: #{tpu_custom_call.1} parent=1 // pred_fallthru
      _
    // Predicated region
    $region46: #{tpu_custom_call.1} parent=1 // pred_check
      _
    $region47: #{tpu_custom_call.1} parent=1 // pred_check_branch
      %528 = sbr.rel (0) target = $region49
    $region48: #{tpu_custom_call.1} parent=1 // pred_region
      _
    $region49: #{tpu_custom_call.1} parent=1 // pred_fallthru
      _
    %529 = vsyncpa [#allocation4], 1

</llo_original>
